<compile_context>
chip_gen: v7x
topology: tpu7x:2x2x1
jax: 0.10.0
libtpu: 0.0.40
codegen_flags: <defaults>
</compile_context>

<pallas_src>
import jax
import jax.numpy as jnp
from jax.experimental import pallas as pl
from jax.experimental.pallas import tpu as pltpu

OUTPUT_DIM = 115          # ModelPath default output_dim
LANE = 128                # TPU lane width; padded output width


def _round_up(n: int, m: int) -> int:
    return ((n + m - 1) // m) * m


def _mlp_fwd_kernel(step_ref, x_ref, w1_ref, b1_ref, w2_ref, b2_ref, out_ref):
    """Fused Linear -> ReLU -> Linear on one (tm, D_in) row tile.

    step_ref is the scalar-prefetched checkpoint index; it was already consumed
    by the index_maps (to pick which checkpoint's weights were DMA'd to VMEM).
    """
    del step_ref
    # Cast x to the MXU compute dtype in-kernel (saves a separate XLA cast pass
    # over x in HBM).
    x = x_ref[...].astype(w1_ref.dtype)                                # (tm, D_in)
    # Layer 1: f32 accumulation on the MXU, bias add + ReLU in f32 (VMEM only).
    h = jnp.dot(x, w1_ref[...], preferred_element_type=jnp.float32)    # (tm, H)
    h = jnp.maximum(h + b1_ref[...], 0.0)
    # Layer 2: cast activation to the weight dtype for the MXU, f32 acc.
    o = jnp.dot(h.astype(w2_ref.dtype), w2_ref[...],
                preferred_element_type=jnp.float32)                    # (tm, 128)
    o = o + b2_ref[...]
    out_ref[...] = o.astype(out_ref.dtype)                             # lane-dense 128-wide store


def _choose_tm(batch: int, block_rows: int) -> int:
    """Row-tile size: multiple of 8, <= block_rows, and >=2 tiles when B > 8
    so the ("parallel",) batch axis can be sharded over both v7x TensorCores."""
    block_rows = max(8, _round_up(int(block_rows), 8))
    n_tiles = max(2, pl.cdiv(batch, block_rows))
    return min(_round_up(pl.cdiv(batch, n_tiles), 8), block_rows)


def mlp_path_forward(x, step_idx, w1_all, b1_all, w2_all, b2_all, *,
                     block_rows=1024, out_dim=OUTPUT_DIM,
                     out_dtype=jnp.bfloat16):
    """Run the 2-layer MLP at checkpoint `step_idx[0]` on inputs x (B, D_in)."""
    B, d_in = x.shape
    _, _, hidden = w1_all.shape
    n_pad = w2_all.shape[-1]                       # padded output width (mult of 128)

    tm = _choose_tm(B, block_rows)
    out_rows = _round_up(B, 8)                     # sublane-aligned output rows
    grid = (pl.cdiv(out_rows, tm),)                # ragged last tile handled by Pallas

    # VMEM budget: double-buffered x/out tiles + the checkpoint weights, plus
    # headroom; clamped to a range that is safe on v5e/v6e (128 MiB) and v7x
    # (64 MiB physical / 32 MiB default scoped).
    w_bytes = jnp.dtype(w1_all.dtype).itemsize
    est = (2 * tm * d_in * jnp.dtype(x.dtype).itemsize
           + 2 * tm * n_pad * jnp.dtype(out_dtype).itemsize
           + 2 * (d_in * hidden + hidden * n_pad) * w_bytes
           + 2 * (hidden + n_pad) * 4)
    vmem_limit = int(min(max(2 * est + (4 << 20), 16 << 20), 48 << 20))

    # NOTE: the four weight/bias blocks have a grid-constant block index, so
    # single-buffering them (pipeline_mode=pl.Buffered(1)) would halve their
    # VMEM footprint for very large checkpoints; left at the default buffering
    # here since pipeline_mode support for the outer TPU grid varies by JAX
    # version and the weights are tiny at these sizes.
    out = pl.pallas_call(
        _mlp_fwd_kernel,
        out_shape=jax.ShapeDtypeStruct((out_rows, n_pad), out_dtype),
        grid_spec=pltpu.PrefetchScalarGridSpec(
            num_scalar_prefetch=1,                 # the checkpoint index
            grid=grid,
            in_specs=[
                # x: stream row tiles over the batch grid axis (caller dtype).
                pl.BlockSpec((tm, d_in), lambda i, step: (i, 0)),
                # Weights / biases: full blocks, VMEM-resident across the grid;
                # checkpoint selected via the scalar-prefetched index.
                pl.BlockSpec((None, d_in, hidden),  lambda i, step: (step[0], 0, 0)),
                pl.BlockSpec((None, 1, hidden),     lambda i, step: (step[0], 0, 0)),
                pl.BlockSpec((None, hidden, n_pad), lambda i, step: (step[0], 0, 0)),
                pl.BlockSpec((None, 1, n_pad),      lambda i, step: (step[0], 0, 0)),
            ],
            out_specs=pl.BlockSpec((tm, n_pad), lambda i, step: (i, 0)),
        ),
        compiler_params=pltpu.CompilerParams(
            dimension_semantics=("parallel",),     # batch axis -> megacore shard
            vmem_limit_bytes=vmem_limit,
        ),
    )(step_idx, x, w1_all, b1_all, w2_all, b2_all)

    # ModelPath semantics: (B, output_dim).  When B % 8 == 0 the row trim is a
    # no-op; the column trim drops the 115->128 lane padding.
    return out[:B, :out_dim]


_mlp_path_forward_jit = jax.jit(
    mlp_path_forward,
    static_argnames=("block_rows", "out_dim", "out_dtype"))


class ModelPathPallas:
    """JAX/Pallas analogue of explaind ModelPath wrapping a 2-layer MLP.

    `checkpoints` is a list of param dicts in torch.nn.Linear layout:
        {'fc1.weight': (H, D_in), 'fc1.bias': (H,),
         'fc2.weight': (OUT, H),  'fc2.bias': (OUT,)}
    They are stacked once into (num_steps, ...) device arrays; forward(x, step)
    selects the step-th checkpoint inside the kernel via scalar prefetch -- the
    replacement for `self.model.load_state_dict(self.checkpoints[step])`.
    """
    # TODO(synk): checkpoint file I/O (save/load), checkpoint interpolation,
    # forward_dataloader and the per-parameter gradient feature maps of
    # ModelPath are host / autodiff-side utilities with no Pallas forward-pass
    # equivalent; only forward() is implemented here.

    def __init__(self, checkpoints, output_dim=OUTPUT_DIM,
                 param_dtype=jnp.bfloat16, out_dtype=jnp.bfloat16,
                 block_rows=1024):
        self.output_dim = output_dim
        self.param_dtype = param_dtype
        self.out_dtype = out_dtype
        self.block_rows = block_rows
        self._step_cache = {}                       # reusable device step indices
        n_pad = _round_up(output_dim, LANE)         # lane-dense padded output

        w1s, b1s, w2s, b2s = [], [], [], []
        for ck in checkpoints:
            w1 = jnp.asarray(ck["fc1.weight"]).T              # (D_in, H)
            b1 = jnp.asarray(ck["fc1.bias"])[None, :]         # (1, H)
            w2 = jnp.asarray(ck["fc2.weight"]).T              # (H, OUT)
            b2 = jnp.asarray(ck["fc2.bias"])[None, :]         # (1, OUT)
            pad = n_pad - w2.shape[-1]
            w2 = jnp.pad(w2, ((0, 0), (0, pad)))              # pad OUT -> 128
            b2 = jnp.pad(b2, ((0, 0), (0, pad)))
            w1s.append(w1); b1s.append(b1); w2s.append(w2); b2s.append(b2)

        pd = param_dtype
        self.w1_all = jnp.stack(w1s).astype(pd)               # (S, D_in, H)
        self.b1_all = jnp.stack(b1s).astype(jnp.float32)      # (S, 1, H)
        self.w2_all = jnp.stack(w2s).astype(pd)               # (S, H, 128)
        self.b2_all = jnp.stack(b2s).astype(jnp.float32)      # (S, 1, 128)
        self.num_checkpoints = self.w1_all.shape[0]

    def _step_array(self, step):
        """Reusable device int32 (1,) array for the checkpoint index."""
        if isinstance(step, jax.Array):
            return jnp.reshape(step.astype(jnp.int32), (1,))
        step = int(step)
        arr = self._step_cache.get(step)
        if arr is None:
            arr = jnp.asarray([step], dtype=jnp.int32)
            self._step_cache[step] = arr
        return arr

    def forward(self, x, step=None):
        if step is None:                                      # "latest checkpoint"
            step = self.num_checkpoints - 1
        step_idx = self._step_array(step)
        return _mlp_path_forward_jit(
            x, step_idx, self.w1_all, self.b1_all, self.w2_all, self.b2_all,
            block_rows=self.block_rows, out_dim=self.output_dim,
            out_dtype=self.out_dtype)

    __call__ = forward


if __name__ == "__main__":
    key = jax.random.PRNGKey(0)
    batch, d_in, hidden = 8, 32, 128
    num_steps = 3

    keys = jax.random.split(key, 1 + 4 * num_steps)
    k_x, k_ck = keys[0], keys[1:]
    x = jax.random.normal(k_x, (batch, d_in), dtype=jnp.float32)

    # Checkpoints in torch.nn.Linear layout (out_features, in_features).
    checkpoints = []
    for s in range(num_steps):
        kw1, kb1, kw2, kb2 = k_ck[4 * s: 4 * s + 4]
        checkpoints.append({
            "fc1.weight": 0.1 * jax.random.normal(kw1, (hidden, d_in), jnp.float32),
            "fc1.bias":   0.1 * jax.random.normal(kb1, (hidden,), jnp.float32),
            "fc2.weight": 0.1 * jax.random.normal(kw2, (OUTPUT_DIM, hidden), jnp.float32),
            "fc2.bias":   0.1 * jax.random.normal(kb2, (OUTPUT_DIM,), jnp.float32),
        })

    model_path = ModelPathPallas(checkpoints)

    step = 1
    out = jax.block_until_ready(model_path(x, step=step))
    assert out.shape == (batch, OUTPUT_DIM), out.shape

    # Pure-JAX f32 reference of the same 2-layer MLP at checkpoint `step`.
    ck = checkpoints[step]
    h_ref = jnp.maximum(x @ ck["fc1.weight"].T + ck["fc1.bias"], 0.0)
    ref = h_ref @ ck["fc2.weight"].T + ck["fc2.bias"]
    err = float(jnp.max(jnp.abs(out.astype(jnp.float32) - ref)))
    assert err < 1e-1, f"max abs err vs f32 reference: {err}"

    # Exercise the step=None ("latest checkpoint") path too.
    out_last = jax.block_until_ready(model_path(x))
    assert out_last.shape == (batch, OUTPUT_DIM)

    print("KERNEL_OK")
</pallas_src>

<mosaic_0001>
module attributes {stable_mosaic.version = 11 : i64} {
  func.func @_mlp_fwd_kernel(%arg0: i32, %arg1: memref<1xi32, #tpu.memory_space<smem>>, %arg2: memref<8x32xf32, #tpu.memory_space<vmem>>, %arg3: memref<1x32x128xbf16, #tpu.memory_space<vmem>>, %arg4: memref<1x1x128xf32, #tpu.memory_space<vmem>>, %arg5: memref<1x128x128xbf16, #tpu.memory_space<vmem>>, %arg6: memref<1x1x128xf32, #tpu.memory_space<vmem>>, %arg7: memref<8x128xbf16, #tpu.memory_space<vmem>>) attributes {dimension_semantics = [#tpu.dimension_semantics<parallel>], iteration_bounds = array<i64: 1>, scalar_prefetch = 1 : i64, scratch_operands = 0 : i64, tpu.core_type = #tpu.core_type<tc>, window_params = [{transform_indices = @transform_0, window_bounds = array<i64: 8, 32>}, {transform_indices = @transform_1, window_bounds = array<i64: 1, 32, 128>}, {transform_indices = @transform_2, window_bounds = array<i64: 1, 1, 128>}, {transform_indices = @transform_3, window_bounds = array<i64: 1, 128, 128>}, {transform_indices = @transform_4, window_bounds = array<i64: 1, 1, 128>}, {transform_indices = @transform_5, window_bounds = array<i64: 8, 128>}]} {
    %c0 = arith.constant 0 : index
    %c0_0 = arith.constant 0 : index
    %0 = vector.load %arg2[%c0, %c0_0] : memref<8x32xf32, #tpu.memory_space<vmem>>, vector<8x32xf32>
    %1 = arith.truncf %0 : vector<8x32xf32> to vector<8x32xbf16>
    %c0_1 = arith.constant 0 : index
    %c0_2 = arith.constant 0 : index
    %c0_3 = arith.constant 0 : index
    %2 = vector.load %arg3[%c0_1, %c0_2, %c0_3] : memref<1x32x128xbf16, #tpu.memory_space<vmem>>, vector<1x32x128xbf16>
    %3 = vector.shape_cast %2 : vector<1x32x128xbf16> to vector<32x128xbf16>
    %cst = arith.constant dense<0.000000e+00> : vector<8x128xf32>
    %4 = tpu.matmul %1, %3, %cst {dimension_numbers = #tpu.dot_dimension_numbers<[1], [0], [0], [1], [0, 0, 1, 1], [], []>} : vector<8x32xbf16>, vector<32x128xbf16>, vector<8x128xf32> -> vector<8x128xf32>
    %c0_4 = arith.constant 0 : index
    %c0_5 = arith.constant 0 : index
    %c0_6 = arith.constant 0 : index
    %5 = vector.load %arg4[%c0_4, %c0_5, %c0_6] : memref<1x1x128xf32, #tpu.memory_space<vmem>>, vector<1x1x128xf32>
    %6 = vector.shape_cast %5 : vector<1x1x128xf32> to vector<1x128xf32>
    %7 = vector.broadcast %6 : vector<1x128xf32> to vector<8x128xf32>
    %8 = arith.addf %4, %7 : vector<8x128xf32>
    %cst_7 = arith.constant 0.000000e+00 : f32
    %9 = vector.broadcast %cst_7 : f32 to vector<8x128xf32>
    %10 = arith.maximumf %8, %9 : vector<8x128xf32>
    %11 = arith.truncf %10 : vector<8x128xf32> to vector<8x128xbf16>
    %c0_8 = arith.constant 0 : index
    %c0_9 = arith.constant 0 : index
    %c0_10 = arith.constant 0 : index
    %12 = vector.load %arg5[%c0_8, %c0_9, %c0_10] : memref<1x128x128xbf16, #tpu.memory_space<vmem>>, vector<1x128x128xbf16>
    %13 = vector.shape_cast %12 : vector<1x128x128xbf16> to vector<128x128xbf16>
    %cst_11 = arith.constant dense<0.000000e+00> : vector<8x128xf32>
    %14 = tpu.matmul %11, %13, %cst_11 {dimension_numbers = #tpu.dot_dimension_numbers<[1], [0], [0], [1], [0, 0, 1, 1], [], []>} : vector<8x128xbf16>, vector<128x128xbf16>, vector<8x128xf32> -> vector<8x128xf32>
    %c0_12 = arith.constant 0 : index
    %c0_13 = arith.constant 0 : index
    %c0_14 = arith.constant 0 : index
    %15 = vector.load %arg6[%c0_12, %c0_13, %c0_14] : memref<1x1x128xf32, #tpu.memory_space<vmem>>, vector<1x1x128xf32>
    %16 = vector.shape_cast %15 : vector<1x1x128xf32> to vector<1x128xf32>
    %17 = vector.broadcast %16 : vector<1x128xf32> to vector<8x128xf32>
    %18 = arith.addf %14, %17 : vector<8x128xf32>
    %19 = arith.truncf %18 : vector<8x128xf32> to vector<8x128xbf16>
    %c0_15 = arith.constant 0 : index
    %c0_16 = arith.constant 0 : index
    %20 = vector.load %arg7[%c0_15, %c0_16] : memref<8x128xbf16, #tpu.memory_space<vmem>>, vector<8x128xbf16>
    tpu.vector_store %arg7[%c0_15, %c0_16], %19 {strides = array<i32>} : memref<8x128xbf16, #tpu.memory_space<vmem>>, vector<8x128xbf16>,
    return
  }
  func.func @transform_0(%arg0: i32, %arg1: memref<1xi32, #tpu.memory_space<smem>>) -> (i32, i32) {
    %c0_i32 = arith.constant 0 : i32
    %c0_i32_0 = arith.constant 0 : i32
    return %arg0, %c0_i32 : i32, i32
  }
  func.func @transform_1(%arg0: i32, %arg1: memref<1xi32, #tpu.memory_space<smem>>) -> (i32, i32, i32) {
    %c0 = arith.constant 0 : index
    %0 = memref.load %arg1[%c0] : memref<1xi32, #tpu.memory_space<smem>>
    %c0_i32 = arith.constant 0 : i32
    %c0_i32_0 = arith.constant 0 : i32
    %c0_i32_1 = arith.constant 0 : i32
    return %0, %c0_i32, %c0_i32_0 : i32, i32, i32
  }
  func.func @transform_2(%arg0: i32, %arg1: memref<1xi32, #tpu.memory_space<smem>>) -> (i32, i32, i32) {
    %c0 = arith.constant 0 : index
    %0 = memref.load %arg1[%c0] : memref<1xi32, #tpu.memory_space<smem>>
    %c0_i32 = arith.constant 0 : i32
    %c0_i32_0 = arith.constant 0 : i32
    %c0_i32_1 = arith.constant 0 : i32
    return %0, %c0_i32, %c0_i32_0 : i32, i32, i32
  }
  func.func @transform_3(%arg0: i32, %arg1: memref<1xi32, #tpu.memory_space<smem>>) -> (i32, i32, i32) {
    %c0 = arith.constant 0 : index
    %0 = memref.load %arg1[%c0] : memref<1xi32, #tpu.memory_space<smem>>
    %c0_i32 = arith.constant 0 : i32
    %c0_i32_0 = arith.constant 0 : i32
    %c0_i32_1 = arith.constant 0 : i32
    return %0, %c0_i32, %c0_i32_0 : i32, i32, i32
  }
  func.func @transform_4(%arg0: i32, %arg1: memref<1xi32, #tpu.memory_space<smem>>) -> (i32, i32, i32) {
    %c0 = arith.constant 0 : index
    %0 = memref.load %arg1[%c0] : memref<1xi32, #tpu.memory_space<smem>>
    %c0_i32 = arith.constant 0 : i32
    %c0_i32_0 = arith.constant 0 : i32
    %c0_i32_1 = arith.constant 0 : i32
    return %0, %c0_i32, %c0_i32_0 : i32, i32, i32
  }
  func.func @transform_5(%arg0: i32, %arg1: memref<1xi32, #tpu.memory_space<smem>>) -> (i32, i32) {
    %c0_i32 = arith.constant 0 : i32
    %c0_i32_0 = arith.constant 0 : i32
    return %arg0, %c0_i32 : i32, i32
  }
}

</mosaic_0001>

<llo_original>
// kernel: mlp_path_forward.1
$region0: #{mlp_path_forward.1}
  #allocation0 [shape = 'u32[]', space=smem, size = 0x4, offset = 0x4, fixed_abs, tag = 'smem constant byte address 0x4 - core index']
  #allocation1 [shape = 'u32[144,128]{1,0:T(1,128)}', space=vmem, size = 0x12000, scoped, tag = 'internal scratch']
  #allocation2 [shape = 's32[1]{0}', space=sflag, size = 0x4, scoped, tag = 'scoped memory for mlp_path_forward.1']
  #allocation3 [shape = 's32[1]{0:T(128)S(6)}', space=smem, size = 0x200, scoped, tag = 'prefetched SMEM operand 0']
  %s0 = inlined_call_operand.<no memory space> [shape: s32[1], index: 0, kind: input, shape index: {}]
  %s1 = inlined_call_operand.hbm [shape: f32[8,32], index: 1, kind: input, shape index: {}]
  %s2 = inlined_call_operand.hbm [shape: bf16[3,32,128], index: 2, kind: input, shape index: {}]
  %s3 = inlined_call_operand.vmem [shape: f32[3,1,128], index: 3, kind: input, shape index: {}]
  %s4 = inlined_call_operand.hbm [shape: bf16[3,128,128], index: 4, kind: input, shape index: {}]
  %s5 = inlined_call_operand.vmem [shape: f32[3,1,128], index: 5, kind: input, shape index: {}]
  %s6 = inlined_call_operand.hbm [shape: bf16[8,128], index: 6, kind: output, shape index: {}]
  %s7 = sld [smem:[#allocation0]]
  $region42: #{mlp_path_forward.1} parent=0
    _
  %s9 = ssub.s32 1, %s7
  %s10 = scalar_select 0, %s9, %s7
  %11 = sst [smem:[#allocation3]] %s0
  $region1: #{mlp_path_forward.1} parent=0
    #allocation4 [shape = 'u8[4096]{0}', space=vmem, size = 0x1000, scoped, tag = 'input window, operand 1, single buffered']
    #allocation5 [shape = 's32[1]{0}', space=sflag, size = 0x4, scoped, tag = 'scoped memory for mlp_path_forward.1']
    #allocation6 [shape = 's32[1]{0}', space=sflag, size = 0x4, scoped, tag = 'scoped memory for mlp_path_forward.1']
    #allocation7 [shape = 'u8[8192]{0}', space=vmem, size = 0x2000, scoped, tag = 'input window, operand 2, single buffered']
    #allocation8 [shape = 's32[1]{0}', space=sflag, size = 0x4, scoped, tag = 'scoped memory for mlp_path_forward.1']
    #allocation9 [shape = 'u8[32768]{0}', space=vmem, size = 0x8000, scoped, tag = 'input window, operand 4, single buffered']
    #allocation10 [shape = 'u8[2048]{0}', space=vmem, size = 0x800, scoped, tag = 'output window, operand 0, single buffered']
    %12 = vsyncpa [#allocation5], 0
    %13 = vsyncpa [#allocation8], 0
    %14 = vsyncpa [#allocation6], 0
    // Predicated region
    $region2: #{mlp_path_forward.1} parent=1 // pred_check
      _
    $region3: #{mlp_path_forward.1} parent=1 // pred_check_branch
      %16 = sbr.rel (0) target = $region5
    $region4: #{mlp_path_forward.1} parent=1 // pred_region
      %s18 = ssub.s32 128, 128
      %19 = vsyncadd [#allocation5], %s18
      %s21 = sshll.u32 [#allocation4], 4
      %s22 = int_to_ptr.vmem [resolvable:$true] %s21
      %24 = dma.hbm_to_vmem [thread:$0]  %s1, 128, %s22, [#allocation5]
    $region5: #{mlp_path_forward.1} parent=1 // pred_fallthru
      _
    // Predicated region
    $region6: #{mlp_path_forward.1} parent=1 // pred_check
      _
    $region7: #{mlp_path_forward.1} parent=1 // pred_check_branch
      %26 = sbr.rel (0) target = $region9
    $region8: #{mlp_path_forward.1} parent=1 // pred_region
      %s27 = sld [smem:[#allocation3]]
      %s29 = ssub.s32 256, 256
      %30 = vsyncadd [#allocation8], %s29
      %s31 = smul.addr %s27, 4
      %s32 = smul.addr %s31, 64
      %s33 = scalar_lea.hbm %s2, %s32
      %s34 = sshll.u32 [#allocation7], 4
      %s35 = int_to_ptr.vmem [resolvable:$true] %s34
      %40 = dma.hbm_to_vmem [thread:$0]  %s33, 256, %s35, [#allocation8], 64, 64, 4
    $region9: #{mlp_path_forward.1} parent=1 // pred_fallthru
      _
    // Predicated region
    $region10: #{mlp_path_forward.1} parent=1 // pred_check
      _
    $region11: #{mlp_path_forward.1} parent=1 // pred_check_branch
      %42 = sbr.rel (0) target = $region13
    $region12: #{mlp_path_forward.1} parent=1 // pred_region
      %s43 = sld [smem:[#allocation3]]
      %p44 = scmp.lt.s32.totalorder %s43, 2
      %s45 = scalar_select %p44, %s43, 2
      %s46 = scalar_lea.vmem %s3, %s45
      %s47 = sld [smem:[#allocation3]]
    $region13: #{mlp_path_forward.1} parent=1 // pred_fallthru
      _
    // Predicated region
    $region14: #{mlp_path_forward.1} parent=1 // pred_check
      _
    $region15: #{mlp_path_forward.1} parent=1 // pred_check_branch
      %49 = sbr.rel (0) target = $region17
    $region16: #{mlp_path_forward.1} parent=1 // pred_region
      %s50 = sld [smem:[#allocation3]]
      %s52 = ssub.s32 1024, 1024
      %53 = vsyncadd [#allocation8], %s52
      %s54 = smul.addr %s50, 16
      %s55 = smul.addr %s54, 64
      %s56 = scalar_lea.hbm %s4, %s55
      %s57 = sshll.u32 [#allocation9], 4
      %s58 = int_to_ptr.vmem [resolvable:$true] %s57
      %63 = dma.hbm_to_vmem [thread:$0]  %s56, 1024, %s58, [#allocation8], 64, 64, 4
    $region17: #{mlp_path_forward.1} parent=1 // pred_fallthru
      _
    // Predicated region
    $region18: #{mlp_path_forward.1} parent=1 // pred_check
      _
    $region19: #{mlp_path_forward.1} parent=1 // pred_check_branch
      %65 = sbr.rel (0) target = $region21
    $region20: #{mlp_path_forward.1} parent=1 // pred_region
      %s66 = sld [smem:[#allocation3]]
      %p67 = scmp.lt.s32.totalorder %s66, 2
      %s68 = scalar_select %p67, %s66, 2
      %s69 = scalar_lea.vmem %s5, %s68
      %s70 = sld [smem:[#allocation3]]
    $region21: #{mlp_path_forward.1} parent=1 // pred_fallthru
      _
    // Predicated region
    $region22: #{mlp_path_forward.1} parent=1 // pred_check
      _
    $region23: #{mlp_path_forward.1} parent=1 // pred_check_branch
      %72 = sbr.rel (0) target = $region25
    $region24: #{mlp_path_forward.1} parent=1 // pred_region
      %73 = dma.done [#allocation5], 128
    $region25: #{mlp_path_forward.1} parent=1 // pred_fallthru
      _
    // Predicated region
    $region26: #{mlp_path_forward.1} parent=1 // pred_check
      _
    $region27: #{mlp_path_forward.1} parent=1 // pred_check_branch
      %75 = sbr.rel (0) target = $region29
    $region28: #{mlp_path_forward.1} parent=1 // pred_region
      %76 = dma.done [#allocation8], 256
    $region29: #{mlp_path_forward.1} parent=1 // pred_fallthru
      _
    // Predicated region
    $region30: #{mlp_path_forward.1} parent=1 // pred_check
      _
    $region31: #{mlp_path_forward.1} parent=1 // pred_check_branch
      %78 = sbr.rel (0) target = $region33
    $region32: #{mlp_path_forward.1} parent=1 // pred_region
      %79 = dma.done [#allocation8], 1024
    $region33: #{mlp_path_forward.1} parent=1 // pred_fallthru
      _
    %s80 = sld [smem:[#allocation3]]
    %p81 = scmp.lt.s32.totalorder %s80, 2
    %s82 = scalar_select %p81, %s80, 2
    %s83 = scalar_lea.vmem %s3, %s82
    %s84 = sld [smem:[#allocation3]]
    %p85 = scmp.lt.s32.totalorder %s84, 2
    %s86 = scalar_select %p85, %s84, 2
    %s87 = scalar_lea.vmem %s5, %s86
    %s88 = sld [smem:[#allocation3]]
    %s89 = sld [smem:[#allocation3]]
    %p90 = scmp.lt.s32.totalorder %s89, 2
    %s91 = scalar_select %p90, %s89, 2
    %s92 = scalar_lea.vmem %s3, %s91
    %s93 = sld [smem:[#allocation3]]
    %s94 = sld [smem:[#allocation3]]
    %s95 = sld [smem:[#allocation3]]
    %p96 = scmp.lt.s32.totalorder %s95, 2
    %s97 = scalar_select %p96, %s95, 2
    %s98 = scalar_lea.vmem %s5, %s97
    %s99 = sld [smem:[#allocation3]]
    %v101 = vld [vmem:[#allocation4] sm:$0xff]
    %v102 = vpack.c.bf16 %v101, %v101
    %v103 = vld [vmem:[#allocation7] sm:$0xf]
    %v104 = vld [vmem:[#allocation7 + $0x4] sm:$0xf]
    %v105 = vld [vmem:[#allocation7 + $0x8] sm:$0xf]
    %v106 = vld [vmem:[#allocation7 + $0xc] sm:$0xf]
    %v107 = vld [vmem:[%s92] sm:$0x1]
    %v109 = vlaneseq
    %v110 = vshrl.u32 %v109, 7
    %v111 = vsub.s32 0, %v110
    %v112 = vrot.slane %v107, %v111
    %v118 = vunpack.c.l.b16 %v103
    %v119 = vunpack.c.l.b16 %v104
    %v120 = vunpack.c.l.b16 %v105
    %v121 = vunpack.c.l.b16 %v106
    %v122 = vpack.c.b16 %v119, %v118
    %v123 = vpack.c.b16 %v121, %v120
    %vm126 = vcmask 261120
    %v128 = vsel %vm126, %v102, 0
    %130 = vmatprep.subr.bf16.mxu0 0
    %131 = vmatpush1.bf16.msra.mxu0 %v122
    %132 = vmatprep.subr.bf16.mxu0 0
    %133 = vmatpush1.bf16.msra.mxu0 %v123
    %134 = vmatprep.subr.bf16.mxu0 0
    %135 = vmatpush1.bf16.msra.mxu0 0
    %136 = vmatprep.subr.bf16.mxu0 0
    %137 = vmatpush1.bf16.msra.mxu0 0
    %138 = vmatprep.subr.bf16.mxu0 0
    %139 = vmatpush1.bf16.msra.mxu0 0
    %140 = vmatprep.subr.bf16.mxu0 0
    %141 = vmatpush1.bf16.msra.mxu0 0
    %142 = vmatprep.subr.bf16.mxu0 0
    %143 = vmatpush1.bf16.msra.mxu0 0
    %144 = vmatprep.subr.bf16.mxu0 0
    %145 = vmatpush1.bf16.msra.mxu0 0
    %146 = vmatprep.subr.bf16.mxu0 0
    %147 = vmatpush1.bf16.msra.mxu0 0
    %148 = vmatprep.subr.bf16.mxu0 0
    %149 = vmatpush1.bf16.msra.mxu0 0
    %150 = vmatprep.subr.bf16.mxu0 0
    %151 = vmatpush1.bf16.msra.mxu0 0
    %152 = vmatprep.subr.bf16.mxu0 0
    %153 = vmatpush1.bf16.msra.mxu0 0
    %154 = vmatprep.subr.bf16.mxu0 0
    %155 = vmatpush1.bf16.msra.mxu0 0
    %156 = vmatprep.subr.bf16.mxu0 0
    %157 = vmatpush1.bf16.msra.mxu0 0
    %158 = vmatprep.subr.bf16.mxu0 0
    %159 = vmatpush1.bf16.msra.mxu0 0
    %160 = vmatprep.subr.bf16.mxu0 0
    %161 = vmatpush1.bf16.msra.mxu0 0
    %162 = vmatprep.mubr.bf16.mxu0 0
    %163 = vmatmul.mubr.bf16.gmra.mrb[0].mxu0 %v128
    %v164 = vpop.f32.mrb[0].mxu0
    %v165 = vadd.f32 %v112, %v164
    %v166 = vpop.f32.mrb[0].mxu0
    %v167 = vpop.f32.mrb[0].mxu0
    %v168 = vpop.f32.mrb[0].mxu0
    %169 = vdwg.mxu0
    %v170 = vmax.f32 %v165, 0.0
    %v171 = vpack.c.bf16 %v170, %v170
    %v172 = vld [vmem:[#allocation9] sm:$0xf]
    %v173 = vld [vmem:[#allocation9 + $0x4] sm:$0xf]
    %v174 = vld [vmem:[#allocation9 + $0x8] sm:$0xf]
    %v175 = vld [vmem:[#allocation9 + $0xc] sm:$0xf]
    %v176 = vld [vmem:[#allocation9 + $0x10] sm:$0xf]
    %v177 = vld [vmem:[#allocation9 + $0x14] sm:$0xf]
    %v178 = vld [vmem:[#allocation9 + $0x18] sm:$0xf]
    %v179 = vld [vmem:[#allocation9 + $0x1c] sm:$0xf]
    %v180 = vld [vmem:[#allocation9 + $0x20] sm:$0xf]
    %v181 = vld [vmem:[#allocation9 + $0x24] sm:$0xf]
    %v182 = vld [vmem:[#allocation9 + $0x28] sm:$0xf]
    %v183 = vld [vmem:[#allocation9 + $0x2c] sm:$0xf]
    %v184 = vld [vmem:[#allocation9 + $0x30] sm:$0xf]
    %v185 = vld [vmem:[#allocation9 + $0x34] sm:$0xf]
    %v186 = vld [vmem:[#allocation9 + $0x38] sm:$0xf]
    %v187 = vld [vmem:[#allocation9 + $0x3c] sm:$0xf]
    %v188 = vld [vmem:[%s98] sm:$0x1]
    %v190 = vlaneseq
    %v191 = vshrl.u32 %v190, 7
    %v192 = vsub.s32 0, %v191
    %v193 = vrot.slane %v188, %v192
    %v211 = vunpack.c.l.b16 %v172
    %v212 = vunpack.c.l.b16 %v173
    %v213 = vunpack.c.l.b16 %v174
    %v214 = vunpack.c.l.b16 %v175
    %v215 = vunpack.c.l.b16 %v176
    %v216 = vunpack.c.l.b16 %v177
    %v217 = vunpack.c.l.b16 %v178
    %v218 = vunpack.c.l.b16 %v179
    %v219 = vunpack.c.l.b16 %v180
    %v220 = vunpack.c.l.b16 %v181
    %v221 = vunpack.c.l.b16 %v182
    %v222 = vunpack.c.l.b16 %v183
    %v223 = vunpack.c.l.b16 %v184
    %v224 = vunpack.c.l.b16 %v185
    %v225 = vunpack.c.l.b16 %v186
    %v226 = vunpack.c.l.b16 %v187
    %v227 = vpack.c.b16 %v212, %v211
    %v228 = vpack.c.b16 %v214, %v213
    %v229 = vpack.c.b16 %v216, %v215
    %v230 = vpack.c.b16 %v218, %v217
    %v231 = vpack.c.b16 %v220, %v219
    %v232 = vpack.c.b16 %v222, %v221
    %v233 = vpack.c.b16 %v224, %v223
    %v234 = vpack.c.b16 %v226, %v225
    %243 = vmatprep.subr.bf16.mxu0 0
    %244 = vmatpush1.bf16.msra.mxu0 %v227
    %245 = vmatprep.subr.bf16.mxu0 0
    %246 = vmatpush1.bf16.msra.mxu0 %v228
    %247 = vmatprep.subr.bf16.mxu0 0
    %248 = vmatpush1.bf16.msra.mxu0 %v229
    %249 = vmatprep.subr.bf16.mxu0 0
    %250 = vmatpush1.bf16.msra.mxu0 %v230
    %251 = vmatprep.subr.bf16.mxu0 0
    %252 = vmatpush1.bf16.msra.mxu0 %v231
    %253 = vmatprep.subr.bf16.mxu0 0
    %254 = vmatpush1.bf16.msra.mxu0 %v232
    %255 = vmatprep.subr.bf16.mxu0 0
    %256 = vmatpush1.bf16.msra.mxu0 %v233
    %257 = vmatprep.subr.bf16.mxu0 0
    %258 = vmatpush1.bf16.msra.mxu0 %v234
    %259 = vmatprep.subr.bf16.mxu0 0
    %260 = vmatpush1.bf16.msra.mxu0 0
    %261 = vmatprep.subr.bf16.mxu0 0
    %262 = vmatpush1.bf16.msra.mxu0 0
    %263 = vmatprep.subr.bf16.mxu0 0
    %264 = vmatpush1.bf16.msra.mxu0 0
    %265 = vmatprep.subr.bf16.mxu0 0
    %266 = vmatpush1.bf16.msra.mxu0 0
    %267 = vmatprep.subr.bf16.mxu0 0
    %268 = vmatpush1.bf16.msra.mxu0 0
    %269 = vmatprep.subr.bf16.mxu0 0
    %270 = vmatpush1.bf16.msra.mxu0 0
    %271 = vmatprep.subr.bf16.mxu0 0
    %272 = vmatpush1.bf16.msra.mxu0 0
    %273 = vmatprep.subr.bf16.mxu0 0
    %274 = vmatpush1.bf16.msra.mxu0 0
    %275 = vmatprep.mubr.bf16.mxu0 0
    %276 = vmatmul.mubr.bf16.gmra.mrb[0].mxu0 %v171
    %v277 = vpop.f32.mrb[0].mxu0
    %v278 = vadd.f32 %v193, %v277
    %v279 = vpop.f32.mrb[0].mxu0
    %v280 = vpop.f32.mrb[0].mxu0
    %v281 = vpop.f32.mrb[0].mxu0
    %282 = vdwg.mxu0
    %v283 = vpack.c.bf16 %v278, %v278
    %284 = vst [vmem:[#allocation10] sm:$0xf] %v283
    // Predicated region
    $region34: #{mlp_path_forward.1} parent=1 // pred_check
      _
    $region35: #{mlp_path_forward.1} parent=1 // pred_check_branch
      %286 = sbr.rel (0) target = $region37
    $region36: #{mlp_path_forward.1} parent=1 // pred_region
      %s288 = ssub.s32 64, 64
      %289 = vsyncadd [#allocation6], %s288
      %s291 = sshll.u32 [#allocation10], 4
      %s292 = int_to_ptr.vmem [resolvable:$true] %s291
      %294 = dma.vmem_to_hbm [thread:$0]  %s292, 64, %s6, [#allocation6]
    $region37: #{mlp_path_forward.1} parent=1 // pred_fallthru
      _
    // Predicated region
    $region38: #{mlp_path_forward.1} parent=1 // pred_check
      _
    $region39: #{mlp_path_forward.1} parent=1 // pred_check_branch
      %296 = sbr.rel (0) target = $region41
    $region40: #{mlp_path_forward.1} parent=1 // pred_region
      %297 = dma.done [#allocation6], 64
    $region41: #{mlp_path_forward.1} parent=1 // pred_fallthru
      _
    %298 = vsyncpa [#allocation5], 1
    %299 = vsyncpa [#allocation8], 1
    %300 = vsyncpa [#allocation6], 1

</llo_original>
